<compile_context>
chip_gen: v5e
topology: v5e:2x2
jax: 0.10.0
libtpu: 0.0.40
codegen_flags: <defaults>
</compile_context>

<pallas_src>
import jax
import jax.numpy as jnp
from jax.experimental import pallas as pl
from jax.experimental.pallas import tpu as pltpu

# KarateClub dataset constants
NUM_NODES = 34
NUM_FEATURES = 34
NUM_CLASSES = 4
H1, H2, H3 = 4, 4, 2

# ---- packed single-slab layout (rows x 128 lanes, f32) ----------------------
NP = 128                        # node dim padded to a full MXU tile
LANES = 128

A_ROW = 0                       # rows   0:128  A_hat, real [0:34, 0:34]
XW1_ROW = A_ROW + NP            # rows 128:256  X @ W1 precomputed, real [0:34, 0:4]
B1_ROW = XW1_ROW + NP           # row  256      b1, real lanes 0:4
W2_ROW = B1_ROW + 8             # rows 264:392  W2, real [0:4, 0:4]
B2_ROW = W2_ROW + NP            # row  392      b2, real lanes 0:4
W3_ROW = B2_ROW + 8             # rows 400:528  W3, real [0:4, 0:2]
B3_ROW = W3_ROW + NP            # row  528      b3, real lanes 0:2
WC_ROW = B3_ROW + 8             # rows 536:664  [Wc | I2] combined classifier
BC_ROW = WC_ROW + NP            # row  664      bc, real lanes 0:4
P_ROWS = BC_ROW + 8             # 672 rows total (~336 KiB)


def gcn_kernel(p_ref, out_ref):
    # Tile-aligned whole-block reads from the packed slab (no masked slices).
    a = p_ref[A_ROW:A_ROW + NP, :]            # (128, 128) normalized adjacency
    xw1 = p_ref[XW1_ROW:XW1_ROW + NP, :]      # (128, 128) X @ W1 (precomputed)
    b1 = p_ref[B1_ROW:B1_ROW + 1, :]          # (1, 128)
    w2 = p_ref[W2_ROW:W2_ROW + NP, :]         # (128, 128)
    b2 = p_ref[B2_ROW:B2_ROW + 1, :]
    w3 = p_ref[W3_ROW:W3_ROW + NP, :]
    b3 = p_ref[B3_ROW:B3_ROW + 1, :]
    wc = p_ref[WC_ROW:WC_ROW + NP, :]         # (128, 128) [Wc | I_2 | 0]
    bc = p_ref[BC_ROW:BC_ROW + 1, :]

    f32 = jnp.float32

    # GCNConv layer 1: tanh(A_hat @ (X @ W1) + b1)    (X@W1 folded at pack time)
    h1 = jnp.tanh(jnp.dot(a, xw1, preferred_element_type=f32) + b1)

    # GCNConv layer 2: tanh(A_hat @ (h1 @ W2) + b2)
    h2 = jnp.tanh(
        jnp.dot(a, jnp.dot(h1, w2, preferred_element_type=f32),
                preferred_element_type=f32) + b2)

    # GCNConv layer 3 (2-d embedding): tanh(A_hat @ (h2 @ W3) + b3)
    h3 = jnp.tanh(
        jnp.dot(a, jnp.dot(h2, w3, preferred_element_type=f32),
                preferred_element_type=f32) + b3)

    # Classifier + embedding pass-through in one lane-dense matmul:
    #   lanes 0:4 = h3 @ Wc + bc (logits), lanes 4:6 = h3 (identity), rest = 0.
    out_ref[...] = jnp.dot(h3, wc, preferred_element_type=f32) + bc


_COST = pl.CostEstimate(
    flops=6 * 2 * NP * NP * NP,                 # six 128^3 MXU passes
    transcendentals=3 * NP * NP,                # three (128,128) tanh
    bytes_accessed=(P_ROWS * LANES + NP * LANES) * 4,
)


@jax.jit
def gcn_forward(packed_slab):
    """Fused forward. Returns (logits [N, C], embedding h3 [N, 2])."""
    vmem = pl.BlockSpec(memory_space=pltpu.MemorySpace.VMEM)
    slab = pl.pallas_call(
        gcn_kernel,
        out_shape=jax.ShapeDtypeStruct((NP, LANES), jnp.float32),
        in_specs=[vmem],
        out_specs=vmem,
        cost_estimate=_COST,
    )(packed_slab)
    logits = slab[:NUM_NODES, :NUM_CLASSES]
    h3 = slab[:NUM_NODES, NUM_CLASSES:NUM_CLASSES + H3]
    return logits, h3


def pack_inputs(a_hat, x, params):
    """Pack A_hat, precomputed X@W1 and all weights/biases into one (672,128) slab.

    Done ONCE per (graph, parameters) combination, outside the per-call hot path.
    """
    p = jnp.zeros((P_ROWS, LANES), jnp.float32)
    p = p.at[A_ROW:A_ROW + NUM_NODES, 0:NUM_NODES].set(a_hat)
    xw1 = jnp.dot(x, params["w1"], preferred_element_type=jnp.float32)
    p = p.at[XW1_ROW:XW1_ROW + NUM_NODES, 0:H1].set(xw1)
    p = p.at[B1_ROW, 0:H1].set(params["b1"].reshape(-1))
    p = p.at[W2_ROW:W2_ROW + H1, 0:H2].set(params["w2"])
    p = p.at[B2_ROW, 0:H2].set(params["b2"].reshape(-1))
    p = p.at[W3_ROW:W3_ROW + H2, 0:H3].set(params["w3"])
    p = p.at[B3_ROW, 0:H3].set(params["b3"].reshape(-1))
    # Combined classifier block: Wc in lanes 0:4, identity in lanes 4:6.
    p = p.at[WC_ROW:WC_ROW + H3, 0:NUM_CLASSES].set(params["wc"])
    p = p.at[WC_ROW:WC_ROW + H3,
             NUM_CLASSES:NUM_CLASSES + H3].set(jnp.eye(H3, dtype=jnp.float32))
    p = p.at[BC_ROW, 0:NUM_CLASSES].set(params["bc"].reshape(-1))
    return p


def build_norm_adj(edge_index, num_nodes):
    """Dense D^{-1/2}(A + I)D^{-1/2}; A_hat[dst, src] so propagation is A_hat @ X.

    Self-loops are only added for nodes that do not already have one, matching
    PyG's add_remaining_self_loops. Static per graph: compute ONCE.
    """
    src, dst = edge_index[0], edge_index[1]
    adj = jnp.zeros((num_nodes, num_nodes), jnp.float32).at[dst, src].add(1.0)
    diag = jnp.diagonal(adj)
    adj = adj + jnp.diag(jnp.where(diag == 0.0, 1.0, 0.0))
    deg = jnp.sum(adj, axis=1)
    dinv = jnp.where(deg > 0, jax.lax.rsqrt(deg), 0.0)
    return adj * dinv[:, None] * dinv[None, :]


def gcn_reference(a_hat, x, params):
    """Pure-JAX reference for correctness checking."""
    h1 = jnp.tanh(a_hat @ (x @ params["w1"]) + params["b1"])
    h2 = jnp.tanh(a_hat @ (h1 @ params["w2"]) + params["b2"])
    h3 = jnp.tanh(a_hat @ (h2 @ params["w3"]) + params["b3"])
    out = h3 @ params["wc"] + params["bc"]
    return out, h3


def glorot(key, shape):
    fan_in, fan_out = shape
    limit = jnp.sqrt(6.0 / (fan_in + fan_out))
    return jax.random.uniform(key, shape, jnp.float32, -limit, limit)


def init_params(key):
    ks = jax.random.split(key, 6)
    # GCNConv weights stored as (in, out); biases zero-init (PyG default).
    w1 = glorot(ks[0], (NUM_FEATURES, H1))
    w2 = glorot(ks[1], (H1, H2))
    w3 = glorot(ks[2], (H2, H3))
    b1 = jnp.zeros((1, H1), jnp.float32)
    b2 = jnp.zeros((1, H2), jnp.float32)
    b3 = jnp.zeros((1, H3), jnp.float32)
    # nn.Linear(2, num_classes): uniform weight & bias in +/- 1/sqrt(fan_in).
    lim = 1.0 / jnp.sqrt(jnp.float32(H3))
    wc = jax.random.uniform(ks[3], (H3, NUM_CLASSES), jnp.float32, -lim, lim)
    bc = jax.random.uniform(ks[4], (1, NUM_CLASSES), jnp.float32, -lim, lim)
    return dict(w1=w1, b1=b1, w2=w2, b2=b2, w3=w3, b3=b3, wc=wc, bc=bc)


if __name__ == "__main__":
    key = jax.random.PRNGKey(0)
    k_param, k_edge = jax.random.split(key)

    params = init_params(k_param)

    # KarateClub-style inputs: identity node features, synthetic undirected edges.
    x = jnp.eye(NUM_NODES, NUM_FEATURES, dtype=jnp.float32)
    num_edges = 78
    e = jax.random.randint(k_edge, (2, num_edges), 0, NUM_NODES, dtype=jnp.int32)
    edge_index = jnp.concatenate([e, e[::-1]], axis=1)  # undirected

    # One-time host-side prep (hoisted out of the per-call hot path).
    a_hat = build_norm_adj(edge_index, NUM_NODES)
    packed = pack_inputs(a_hat, x, params)
    jax.block_until_ready(packed)

    out, h = gcn_forward(packed)
    jax.block_until_ready((out, h))

    assert out.shape == (NUM_NODES, NUM_CLASSES)
    assert h.shape == (NUM_NODES, H3)
    assert bool(jnp.all(jnp.isfinite(out))) and bool(jnp.all(jnp.isfinite(h)))

    # Correctness vs pure-JAX reference.
    out_ref, h_ref = gcn_reference(a_hat, x, params)
    assert bool(jnp.allclose(out, out_ref, atol=1e-4, rtol=1e-4))
    assert bool(jnp.allclose(h, h_ref, atol=1e-4, rtol=1e-4))

    print("KERNEL_OK")
</pallas_src>

<mosaic_0001>
module attributes {stable_mosaic.version = 11 : i64} {
  func.func @gcn_kernel(%arg0: memref<672x128xf32, #tpu.memory_space<vmem>>, %arg1: memref<128x128xf32, #tpu.memory_space<vmem>>) attributes {dimension_semantics = [], scalar_prefetch = 0 : i64, scratch_operands = 0 : i64, tpu.core_type = #tpu.core_type<tc>} {
    %c0 = arith.constant 0 : index
    %c0_0 = arith.constant 0 : index
    %0 = vector.load %arg0[%c0, %c0_0] : memref<672x128xf32, #tpu.memory_space<vmem>>, vector<128x128xf32>
    %c128 = arith.constant 128 : index
    %c0_1 = arith.constant 0 : index
    %1 = vector.load %arg0[%c128, %c0_1] : memref<672x128xf32, #tpu.memory_space<vmem>>, vector<128x128xf32>
    %c256 = arith.constant 256 : index
    %c0_2 = arith.constant 0 : index
    %2 = vector.load %arg0[%c256, %c0_2] : memref<672x128xf32, #tpu.memory_space<vmem>>, vector<1x128xf32>
    %c264 = arith.constant 264 : index
    %c0_3 = arith.constant 0 : index
    %3 = vector.load %arg0[%c264, %c0_3] : memref<672x128xf32, #tpu.memory_space<vmem>>, vector<128x128xf32>
    %c392 = arith.constant 392 : index
    %c0_4 = arith.constant 0 : index
    %4 = vector.load %arg0[%c392, %c0_4] : memref<672x128xf32, #tpu.memory_space<vmem>>, vector<1x128xf32>
    %c400 = arith.constant 400 : index
    %c0_5 = arith.constant 0 : index
    %5 = vector.load %arg0[%c400, %c0_5] : memref<672x128xf32, #tpu.memory_space<vmem>>, vector<128x128xf32>
    %c528 = arith.constant 528 : index
    %c0_6 = arith.constant 0 : index
    %6 = vector.load %arg0[%c528, %c0_6] : memref<672x128xf32, #tpu.memory_space<vmem>>, vector<1x128xf32>
    %c536 = arith.constant 536 : index
    %c0_7 = arith.constant 0 : index
    %7 = vector.load %arg0[%c536, %c0_7] : memref<672x128xf32, #tpu.memory_space<vmem>>, vector<128x128xf32>
    %c664 = arith.constant 664 : index
    %c0_8 = arith.constant 0 : index
    %8 = vector.load %arg0[%c664, %c0_8] : memref<672x128xf32, #tpu.memory_space<vmem>>, vector<1x128xf32>
    %cst = arith.constant dense<0.000000e+00> : vector<128x128xf32>
    %9 = tpu.matmul %0, %1, %cst {dimension_numbers = #tpu.dot_dimension_numbers<[1], [0], [0], [1], [0, 0, 1, 1], [], []>} : vector<128x128xf32>, vector<128x128xf32>, vector<128x128xf32> -> vector<128x128xf32>
    %10 = vector.broadcast %2 : vector<1x128xf32> to vector<128x128xf32>
    %11 = arith.addf %9, %10 : vector<128x128xf32>
    %12 = math.tanh %11 : vector<128x128xf32>
    %cst_9 = arith.constant dense<0.000000e+00> : vector<128x128xf32>
    %13 = tpu.matmul %12, %3, %cst_9 {dimension_numbers = #tpu.dot_dimension_numbers<[1], [0], [0], [1], [0, 0, 1, 1], [], []>} : vector<128x128xf32>, vector<128x128xf32>, vector<128x128xf32> -> vector<128x128xf32>
    %cst_10 = arith.constant dense<0.000000e+00> : vector<128x128xf32>
    %14 = tpu.matmul %0, %13, %cst_10 {dimension_numbers = #tpu.dot_dimension_numbers<[1], [0], [0], [1], [0, 0, 1, 1], [], []>} : vector<128x128xf32>, vector<128x128xf32>, vector<128x128xf32> -> vector<128x128xf32>
    %15 = vector.broadcast %4 : vector<1x128xf32> to vector<128x128xf32>
    %16 = arith.addf %14, %15 : vector<128x128xf32>
    %17 = math.tanh %16 : vector<128x128xf32>
    %cst_11 = arith.constant dense<0.000000e+00> : vector<128x128xf32>
    %18 = tpu.matmul %17, %5, %cst_11 {dimension_numbers = #tpu.dot_dimension_numbers<[1], [0], [0], [1], [0, 0, 1, 1], [], []>} : vector<128x128xf32>, vector<128x128xf32>, vector<128x128xf32> -> vector<128x128xf32>
    %cst_12 = arith.constant dense<0.000000e+00> : vector<128x128xf32>
    %19 = tpu.matmul %0, %18, %cst_12 {dimension_numbers = #tpu.dot_dimension_numbers<[1], [0], [0], [1], [0, 0, 1, 1], [], []>} : vector<128x128xf32>, vector<128x128xf32>, vector<128x128xf32> -> vector<128x128xf32>
    %20 = vector.broadcast %6 : vector<1x128xf32> to vector<128x128xf32>
    %21 = arith.addf %19, %20 : vector<128x128xf32>
    %22 = math.tanh %21 : vector<128x128xf32>
    %cst_13 = arith.constant dense<0.000000e+00> : vector<128x128xf32>
    %23 = tpu.matmul %22, %7, %cst_13 {dimension_numbers = #tpu.dot_dimension_numbers<[1], [0], [0], [1], [0, 0, 1, 1], [], []>} : vector<128x128xf32>, vector<128x128xf32>, vector<128x128xf32> -> vector<128x128xf32>
    %24 = vector.broadcast %8 : vector<1x128xf32> to vector<128x128xf32>
    %25 = arith.addf %23, %24 : vector<128x128xf32>
    %c0_14 = arith.constant 0 : index
    %c0_15 = arith.constant 0 : index
    %26 = vector.load %arg1[%c0_14, %c0_15] : memref<128x128xf32, #tpu.memory_space<vmem>>, vector<128x128xf32>
    tpu.vector_store %arg1[%c0_14, %c0_15], %25 {strides = array<i32>} : memref<128x128xf32, #tpu.memory_space<vmem>>, vector<128x128xf32>,
    return
  }
}

</mosaic_0001>

<llo_original>
// kernel: gcn_forward.1
$region0: #{gcn_forward.1}
  #allocation0 [shape = 'u32[]', space=smem, size = 0x4, offset = 0x4, fixed_abs, tag = 'smem constant byte address 0x4 - core index']
  #allocation1 [shape = 'u32[72,128]{1,0:T(1,128)}', space=vmem, size = 0x9000, scoped, tag = 'internal scratch']
  %s0 = inlined_call_operand.hbm [shape: f32[672,128], index: 0, kind: input, shape index: {}]
  %s1 = inlined_call_operand.vmem [shape: f32[128,128], index: 1, kind: output, shape index: {}]
  %s2 = sld [smem:[#allocation0]]
  $region18: #{gcn_forward.1} parent=0
    _
  %s4 = ssub.s32 1, %s2
  %s5 = scalar_select 0, %s4, %s2
  $region1: #{gcn_forward.1} parent=0
    #allocation2 [shape = 'u8[344064]{0}', space=vmem, size = 0x54000, scoped, tag = 'input window, operand 0, single buffered']
    #allocation3 [shape = 's32[1]{0}', space=sflag, size = 0x4, scoped, tag = 'scoped memory for gcn_forward.1']
    %6 = vsyncpa [#allocation3], 0
    // Predicated region
    $region2: #{gcn_forward.1} parent=1 // pred_check
      _
    $region3: #{gcn_forward.1} parent=1 // pred_check_branch
      %8 = sbr.rel (0) target = $region5
    $region4: #{gcn_forward.1} parent=1 // pred_region
      %10 = vsyncadd [#allocation3], 0
      %s11 = sshll.u32 %s0, 4
      %s12 = int_to_ptr.hbm [resolvable:$true] %s11
      %s13 = sshll.u32 [#allocation2], 4
      %s14 = int_to_ptr.vmem [resolvable:$true] %s13
      %19 = dma.hbm_to_vmem [thread:$0]  %s12, 10752, %s14, [#allocation3], 128, 128, 8
    $region5: #{gcn_forward.1} parent=1 // pred_fallthru
      _
    // Predicated region
    $region6: #{gcn_forward.1} parent=1 // pred_check
      _
    $region7: #{gcn_forward.1} parent=1 // pred_check_branch
      %21 = sbr.rel (0) target = $region9
    $region8: #{gcn_forward.1} parent=1 // pred_region
      %23 = dma.done [#allocation3], 10752
    $region9: #{gcn_forward.1} parent=1 // pred_fallthru
      _
    %v24 = vld [vmem:[#allocation2] sm:$0xff]
    %v25 = vld [vmem:[#allocation2 + $0x8] sm:$0xff]
    %v26 = vld [vmem:[#allocation2 + $0x10] sm:$0xff]
    %v27 = vld [vmem:[#allocation2 + $0x18] sm:$0xff]
    %v28 = vld [vmem:[#allocation2 + $0x20] sm:$0xff]
    %v29 = vld [vmem:[#allocation2 + $0x28] sm:$0xff]
    %v30 = vld [vmem:[#allocation2 + $0x30] sm:$0xff]
    %v31 = vld [vmem:[#allocation2 + $0x38] sm:$0xff]
    %v32 = vld [vmem:[#allocation2 + $0x40] sm:$0xff]
    %v33 = vld [vmem:[#allocation2 + $0x48] sm:$0xff]
    %v34 = vld [vmem:[#allocation2 + $0x50] sm:$0xff]
    %v35 = vld [vmem:[#allocation2 + $0x58] sm:$0xff]
    %v36 = vld [vmem:[#allocation2 + $0x60] sm:$0xff]
    %v37 = vld [vmem:[#allocation2 + $0x68] sm:$0xff]
    %v38 = vld [vmem:[#allocation2 + $0x70] sm:$0xff]
    %v39 = vld [vmem:[#allocation2 + $0x78] sm:$0xff]
    %v40 = vld [vmem:[#allocation2 + $0x80] sm:$0xff]
    %v41 = vld [vmem:[#allocation2 + $0x88] sm:$0xff]
    %v42 = vld [vmem:[#allocation2 + $0x90] sm:$0xff]
    %v43 = vld [vmem:[#allocation2 + $0x98] sm:$0xff]
    %v44 = vld [vmem:[#allocation2 + $0xa0] sm:$0xff]
    %v45 = vld [vmem:[#allocation2 + $0xa8] sm:$0xff]
    %v46 = vld [vmem:[#allocation2 + $0xb0] sm:$0xff]
    %v47 = vld [vmem:[#allocation2 + $0xb8] sm:$0xff]
    %v48 = vld [vmem:[#allocation2 + $0xc0] sm:$0xff]
    %v49 = vld [vmem:[#allocation2 + $0xc8] sm:$0xff]
    %v50 = vld [vmem:[#allocation2 + $0xd0] sm:$0xff]
    %v51 = vld [vmem:[#allocation2 + $0xd8] sm:$0xff]
    %v52 = vld [vmem:[#allocation2 + $0xe0] sm:$0xff]
    %v53 = vld [vmem:[#allocation2 + $0xe8] sm:$0xff]
    %v54 = vld [vmem:[#allocation2 + $0xf0] sm:$0xff]
    %v55 = vld [vmem:[#allocation2 + $0xf8] sm:$0xff]
    %v56 = vld [vmem:[#allocation2 + $0x100] sm:$0x1]
    %v57 = vld [vmem:[#allocation2 + $0x108] sm:$0xff]
    %v58 = vld [vmem:[#allocation2 + $0x110] sm:$0xff]
    %v59 = vld [vmem:[#allocation2 + $0x118] sm:$0xff]
    %v60 = vld [vmem:[#allocation2 + $0x120] sm:$0xff]
    %v61 = vld [vmem:[#allocation2 + $0x128] sm:$0xff]
    %v62 = vld [vmem:[#allocation2 + $0x130] sm:$0xff]
    %v63 = vld [vmem:[#allocation2 + $0x138] sm:$0xff]
    %v64 = vld [vmem:[#allocation2 + $0x140] sm:$0xff]
    %v65 = vld [vmem:[#allocation2 + $0x148] sm:$0xff]
    %v66 = vld [vmem:[#allocation2 + $0x150] sm:$0xff]
    %v67 = vld [vmem:[#allocation2 + $0x158] sm:$0xff]
    %v68 = vld [vmem:[#allocation2 + $0x160] sm:$0xff]
    %v69 = vld [vmem:[#allocation2 + $0x168] sm:$0xff]
    %v70 = vld [vmem:[#allocation2 + $0x170] sm:$0xff]
    %v71 = vld [vmem:[#allocation2 + $0x178] sm:$0xff]
    %v72 = vld [vmem:[#allocation2 + $0x180] sm:$0xff]
    %v73 = vld [vmem:[#allocation2 + $0x188] sm:$0x1]
    %v74 = vld [vmem:[#allocation2 + $0x190] sm:$0xff]
    %v75 = vld [vmem:[#allocation2 + $0x198] sm:$0xff]
    %v76 = vld [vmem:[#allocation2 + $0x1a0] sm:$0xff]
    %v77 = vld [vmem:[#allocation2 + $0x1a8] sm:$0xff]
    %v78 = vld [vmem:[#allocation2 + $0x1b0] sm:$0xff]
    %v79 = vld [vmem:[#allocation2 + $0x1b8] sm:$0xff]
    %v80 = vld [vmem:[#allocation2 + $0x1c0] sm:$0xff]
    %v81 = vld [vmem:[#allocation2 + $0x1c8] sm:$0xff]
    %v82 = vld [vmem:[#allocation2 + $0x1d0] sm:$0xff]
    %v83 = vld [vmem:[#allocation2 + $0x1d8] sm:$0xff]
    %v84 = vld [vmem:[#allocation2 + $0x1e0] sm:$0xff]
    %v85 = vld [vmem:[#allocation2 + $0x1e8] sm:$0xff]
    %v86 = vld [vmem:[#allocation2 + $0x1f0] sm:$0xff]
    %v87 = vld [vmem:[#allocation2 + $0x1f8] sm:$0xff]
    %v88 = vld [vmem:[#allocation2 + $0x200] sm:$0xff]
    %v89 = vld [vmem:[#allocation2 + $0x208] sm:$0xff]
    %v90 = vld [vmem:[#allocation2 + $0x210] sm:$0x1]
    %v91 = vld [vmem:[#allocation2 + $0x218] sm:$0xff]
    %v92 = vld [vmem:[#allocation2 + $0x220] sm:$0xff]
    %v93 = vld [vmem:[#allocation2 + $0x228] sm:$0xff]
    %v94 = vld [vmem:[#allocation2 + $0x230] sm:$0xff]
    %v95 = vld [vmem:[#allocation2 + $0x238] sm:$0xff]
    %v96 = vld [vmem:[#allocation2 + $0x240] sm:$0xff]
    %v97 = vld [vmem:[#allocation2 + $0x248] sm:$0xff]
    %v98 = vld [vmem:[#allocation2 + $0x250] sm:$0xff]
    %v99 = vld [vmem:[#allocation2 + $0x258] sm:$0xff]
    %v100 = vld [vmem:[#allocation2 + $0x260] sm:$0xff]
    %v101 = vld [vmem:[#allocation2 + $0x268] sm:$0xff]
    %v102 = vld [vmem:[#allocation2 + $0x270] sm:$0xff]
    %v103 = vld [vmem:[#allocation2 + $0x278] sm:$0xff]
    %v104 = vld [vmem:[#allocation2 + $0x280] sm:$0xff]
    %v105 = vld [vmem:[#allocation2 + $0x288] sm:$0xff]
    %v106 = vld [vmem:[#allocation2 + $0x290] sm:$0xff]
    %v107 = vld [vmem:[#allocation2 + $0x298] sm:$0x1]
    %v108 = vperm.slane %v56, 0
    %109 = vmatpush.msra.mxu0 %v55
    %110 = vmatpush.msra.mxu0 %v54
    %111 = vmatpush.msra.mxu0 %v53
    %112 = vmatpush.msra.mxu0 %v52
    %113 = vmatpush.msra.mxu0 %v51
    %114 = vmatpush.msra.mxu0 %v50
    %115 = vmatpush.msra.mxu0 %v49
    %116 = vmatpush.msra.mxu0 %v48
    %117 = vmatpush.msra.mxu0 %v47
    %118 = vmatpush.msra.mxu0 %v46
    %119 = vmatpush.msra.mxu0 %v45
    %120 = vmatpush.msra.mxu0 %v44
    %121 = vmatpush.msra.mxu0 %v43
    %122 = vmatpush.msra.mxu0 %v42
    %123 = vmatpush.msra.mxu0 %v41
    %124 = vmatpush.msra.mxu0 %v40
    %125 = vmatmul.f32.gmra.mxu0 %v24
    %v126 = vpop.f32.mrf.mxu0
    %v127 = vadd.f32 %v108, %v126
    %128 = vmatmul.f32.gmra.mxu0 %v25
    %v129 = vpop.f32.mrf.mxu0
    %v130 = vadd.f32 %v108, %v129
    %131 = vmatmul.f32.gmra.mxu0 %v26
    %v132 = vpop.f32.mrf.mxu0
    %v133 = vadd.f32 %v108, %v132
    %134 = vmatmul.f32.gmra.mxu0 %v27
    %v135 = vpop.f32.mrf.mxu0
    %v136 = vadd.f32 %v108, %v135
    %137 = vmatmul.f32.gmra.mxu0 %v28
    %v138 = vpop.f32.mrf.mxu0
    %v139 = vadd.f32 %v108, %v138
    %140 = vmatmul.f32.gmra.mxu0 %v29
    %v141 = vpop.f32.mrf.mxu0
    %v142 = vadd.f32 %v108, %v141
    %143 = vmatmul.f32.gmra.mxu0 %v30
    %v144 = vpop.f32.mrf.mxu0
    %v145 = vadd.f32 %v108, %v144
    %146 = vmatmul.f32.gmra.mxu0 %v31
    %v147 = vpop.f32.mrf.mxu0
    %v148 = vadd.f32 %v108, %v147
    %149 = vmatmul.f32.gmra.mxu0 %v32
    %v150 = vpop.f32.mrf.mxu0
    %v151 = vadd.f32 %v108, %v150
    %152 = vmatmul.f32.gmra.mxu0 %v33
    %v153 = vpop.f32.mrf.mxu0
    %v154 = vadd.f32 %v108, %v153
    %155 = vmatmul.f32.gmra.mxu0 %v34
    %v156 = vpop.f32.mrf.mxu0
    %v157 = vadd.f32 %v108, %v156
    %158 = vmatmul.f32.gmra.mxu0 %v35
    %v159 = vpop.f32.mrf.mxu0
    %v160 = vadd.f32 %v108, %v159
    %161 = vmatmul.f32.gmra.mxu0 %v36
    %v162 = vpop.f32.mrf.mxu0
    %v163 = vadd.f32 %v108, %v162
    %164 = vmatmul.f32.gmra.mxu0 %v37
    %v165 = vpop.f32.mrf.mxu0
    %v166 = vadd.f32 %v108, %v165
    %167 = vmatmul.f32.gmra.mxu0 %v38
    %v168 = vpop.f32.mrf.mxu0
    %v169 = vadd.f32 %v108, %v168
    %170 = vmatmul.f32.gmra.mxu0 %v39
    %v171 = vpop.f32.mrf.mxu0
    %v172 = vadd.f32 %v108, %v171
    %173 = vdwg.mxu0
    %v174 = vtanh.pop %v127
    %v175 = vtanh.pop %v130
    %v176 = vtanh.pop %v133
    %v177 = vtanh.pop %v136
    %v178 = vtanh.pop %v139
    %v179 = vtanh.pop %v142
    %v180 = vtanh.pop %v145
    %v181 = vtanh.pop %v148
    %v182 = vtanh.pop %v151
    %v183 = vtanh.pop %v154
    %v184 = vtanh.pop %v157
    %v185 = vtanh.pop %v160
    %v186 = vtanh.pop %v163
    %v187 = vtanh.pop %v166
    %v188 = vtanh.pop %v169
    %v189 = vtanh.pop %v172
    %190 = vmatpush.msra.mxu0 %v72
    %191 = vmatpush.msra.mxu0 %v71
    %192 = vmatpush.msra.mxu0 %v70
    %193 = vmatpush.msra.mxu0 %v69
    %194 = vmatpush.msra.mxu0 %v68
    %195 = vmatpush.msra.mxu0 %v67
    %196 = vmatpush.msra.mxu0 %v66
    %197 = vmatpush.msra.mxu0 %v65
    %198 = vmatpush.msra.mxu0 %v64
    %199 = vmatpush.msra.mxu0 %v63
    %200 = vmatpush.msra.mxu0 %v62
    %201 = vmatpush.msra.mxu0 %v61
    %202 = vmatpush.msra.mxu0 %v60
    %203 = vmatpush.msra.mxu0 %v59
    %204 = vmatpush.msra.mxu0 %v58
    %205 = vmatpush.msra.mxu0 %v57
    %206 = vmatmul.f32.gmra.mxu0 %v174
    %v207 = vpop.f32.mrf.mxu0
    %v208 = vadd.f32 0.0, %v207
    %209 = vmatmul.f32.gmra.mxu0 %v175
    %v210 = vpop.f32.mrf.mxu0
    %v211 = vadd.f32 0.0, %v210
    %212 = vmatmul.f32.gmra.mxu0 %v176
    %v213 = vpop.f32.mrf.mxu0
    %v214 = vadd.f32 0.0, %v213
    %215 = vmatmul.f32.gmra.mxu0 %v177
    %v216 = vpop.f32.mrf.mxu0
    %v217 = vadd.f32 0.0, %v216
    %218 = vmatmul.f32.gmra.mxu0 %v178
    %v219 = vpop.f32.mrf.mxu0
    %v220 = vadd.f32 0.0, %v219
    %221 = vmatmul.f32.gmra.mxu0 %v179
    %v222 = vpop.f32.mrf.mxu0
    %v223 = vadd.f32 0.0, %v222
    %224 = vmatmul.f32.gmra.mxu0 %v180
    %v225 = vpop.f32.mrf.mxu0
    %v226 = vadd.f32 0.0, %v225
    %227 = vmatmul.f32.gmra.mxu0 %v181
    %v228 = vpop.f32.mrf.mxu0
    %v229 = vadd.f32 0.0, %v228
    %230 = vmatmul.f32.gmra.mxu0 %v182
    %v231 = vpop.f32.mrf.mxu0
    %v232 = vadd.f32 0.0, %v231
    %233 = vmatmul.f32.gmra.mxu0 %v183
    %v234 = vpop.f32.mrf.mxu0
    %v235 = vadd.f32 0.0, %v234
    %236 = vmatmul.f32.gmra.mxu0 %v184
    %v237 = vpop.f32.mrf.mxu0
    %v238 = vadd.f32 0.0, %v237
    %239 = vmatmul.f32.gmra.mxu0 %v185
    %v240 = vpop.f32.mrf.mxu0
    %v241 = vadd.f32 0.0, %v240
    %242 = vmatmul.f32.gmra.mxu0 %v186
    %v243 = vpop.f32.mrf.mxu0
    %v244 = vadd.f32 0.0, %v243
    %245 = vmatmul.f32.gmra.mxu0 %v187
    %v246 = vpop.f32.mrf.mxu0
    %v247 = vadd.f32 0.0, %v246
    %248 = vmatmul.f32.gmra.mxu0 %v188
    %v249 = vpop.f32.mrf.mxu0
    %v250 = vadd.f32 0.0, %v249
    %251 = vmatmul.f32.gmra.mxu0 %v189
    %v252 = vpop.f32.mrf.mxu0
    %v253 = vadd.f32 0.0, %v252
    %254 = vdwg.mxu0
    %v255 = vperm.slane %v73, 0
    %256 = vmatpush.msra.mxu0 %v253
    %257 = vmatpush.msra.mxu0 %v250
    %258 = vmatpush.msra.mxu0 %v247
    %259 = vmatpush.msra.mxu0 %v244
    %260 = vmatpush.msra.mxu0 %v241
    %261 = vmatpush.msra.mxu0 %v238
    %262 = vmatpush.msra.mxu0 %v235
    %263 = vmatpush.msra.mxu0 %v232
    %264 = vmatpush.msra.mxu0 %v229
    %265 = vmatpush.msra.mxu0 %v226
    %266 = vmatpush.msra.mxu0 %v223
    %267 = vmatpush.msra.mxu0 %v220
    %268 = vmatpush.msra.mxu0 %v217
    %269 = vmatpush.msra.mxu0 %v214
    %270 = vmatpush.msra.mxu0 %v211
    %271 = vmatpush.msra.mxu0 %v208
    %272 = vmatmul.f32.gmra.mxu0 %v24
    %v273 = vpop.f32.mrf.mxu0
    %v274 = vadd.f32 %v255, %v273
    %275 = vmatmul.f32.gmra.mxu0 %v25
    %v276 = vpop.f32.mrf.mxu0
    %v277 = vadd.f32 %v255, %v276
    %278 = vmatmul.f32.gmra.mxu0 %v26
    %v279 = vpop.f32.mrf.mxu0
    %v280 = vadd.f32 %v255, %v279
    %281 = vmatmul.f32.gmra.mxu0 %v27
    %v282 = vpop.f32.mrf.mxu0
    %v283 = vadd.f32 %v255, %v282
    %284 = vmatmul.f32.gmra.mxu0 %v28
    %v285 = vpop.f32.mrf.mxu0
    %v286 = vadd.f32 %v255, %v285
    %287 = vmatmul.f32.gmra.mxu0 %v29
    %v288 = vpop.f32.mrf.mxu0
    %v289 = vadd.f32 %v255, %v288
    %290 = vmatmul.f32.gmra.mxu0 %v30
    %v291 = vpop.f32.mrf.mxu0
    %v292 = vadd.f32 %v255, %v291
    %293 = vmatmul.f32.gmra.mxu0 %v31
    %v294 = vpop.f32.mrf.mxu0
    %v295 = vadd.f32 %v255, %v294
    %296 = vmatmul.f32.gmra.mxu0 %v32
    %v297 = vpop.f32.mrf.mxu0
    %v298 = vadd.f32 %v255, %v297
    %299 = vmatmul.f32.gmra.mxu0 %v33
    %v300 = vpop.f32.mrf.mxu0
    %v301 = vadd.f32 %v255, %v300
    %302 = vmatmul.f32.gmra.mxu0 %v34
    %v303 = vpop.f32.mrf.mxu0
    %v304 = vadd.f32 %v255, %v303
    %305 = vmatmul.f32.gmra.mxu0 %v35
    %v306 = vpop.f32.mrf.mxu0
    %v307 = vadd.f32 %v255, %v306
    %308 = vmatmul.f32.gmra.mxu0 %v36
    %v309 = vpop.f32.mrf.mxu0
    %v310 = vadd.f32 %v255, %v309
    %311 = vmatmul.f32.gmra.mxu0 %v37
    %v312 = vpop.f32.mrf.mxu0
    %v313 = vadd.f32 %v255, %v312
    %314 = vmatmul.f32.gmra.mxu0 %v38
    %v315 = vpop.f32.mrf.mxu0
    %v316 = vadd.f32 %v255, %v315
    %317 = vmatmul.f32.gmra.mxu0 %v39
    %v318 = vpop.f32.mrf.mxu0
    %v319 = vadd.f32 %v255, %v318
    %320 = vdwg.mxu0
    %v321 = vtanh.pop %v274
    %v322 = vtanh.pop %v277
    %v323 = vtanh.pop %v280
    %v324 = vtanh.pop %v283
    %v325 = vtanh.pop %v286
    %v326 = vtanh.pop %v289
    %v327 = vtanh.pop %v292
    %v328 = vtanh.pop %v295
    %v329 = vtanh.pop %v298
    %v330 = vtanh.pop %v301
    %v331 = vtanh.pop %v304
    %v332 = vtanh.pop %v307
    %v333 = vtanh.pop %v310
    %v334 = vtanh.pop %v313
    %v335 = vtanh.pop %v316
    %v336 = vtanh.pop %v319
    %337 = vmatpush.msra.mxu0 %v89
    %338 = vmatpush.msra.mxu0 %v88
    %339 = vmatpush.msra.mxu0 %v87
    %340 = vmatpush.msra.mxu0 %v86
    %341 = vmatpush.msra.mxu0 %v85
    %342 = vmatpush.msra.mxu0 %v84
    %343 = vmatpush.msra.mxu0 %v83
    %344 = vmatpush.msra.mxu0 %v82
    %345 = vmatpush.msra.mxu0 %v81
    %346 = vmatpush.msra.mxu0 %v80
    %347 = vmatpush.msra.mxu0 %v79
    %348 = vmatpush.msra.mxu0 %v78
    %349 = vmatpush.msra.mxu0 %v77
    %350 = vmatpush.msra.mxu0 %v76
    %351 = vmatpush.msra.mxu0 %v75
    %352 = vmatpush.msra.mxu0 %v74
    %353 = vmatmul.f32.gmra.mxu0 %v321
    %v354 = vpop.f32.mrf.mxu0
    %v355 = vadd.f32 0.0, %v354
    %356 = vmatmul.f32.gmra.mxu0 %v322
    %v357 = vpop.f32.mrf.mxu0
    %v358 = vadd.f32 0.0, %v357
    %359 = vmatmul.f32.gmra.mxu0 %v323
    %v360 = vpop.f32.mrf.mxu0
    %v361 = vadd.f32 0.0, %v360
    %362 = vmatmul.f32.gmra.mxu0 %v324
    %v363 = vpop.f32.mrf.mxu0
    %v364 = vadd.f32 0.0, %v363
    %365 = vmatmul.f32.gmra.mxu0 %v325
    %v366 = vpop.f32.mrf.mxu0
    %v367 = vadd.f32 0.0, %v366
    %368 = vmatmul.f32.gmra.mxu0 %v326
    %v369 = vpop.f32.mrf.mxu0
    %v370 = vadd.f32 0.0, %v369
    %371 = vmatmul.f32.gmra.mxu0 %v327
    %v372 = vpop.f32.mrf.mxu0
    %v373 = vadd.f32 0.0, %v372
    %374 = vmatmul.f32.gmra.mxu0 %v328
    %v375 = vpop.f32.mrf.mxu0
    %v376 = vadd.f32 0.0, %v375
    %377 = vmatmul.f32.gmra.mxu0 %v329
    %v378 = vpop.f32.mrf.mxu0
    %v379 = vadd.f32 0.0, %v378
    %380 = vmatmul.f32.gmra.mxu0 %v330
    %v381 = vpop.f32.mrf.mxu0
    %v382 = vadd.f32 0.0, %v381
    %383 = vmatmul.f32.gmra.mxu0 %v331
    %v384 = vpop.f32.mrf.mxu0
    %v385 = vadd.f32 0.0, %v384
    %386 = vmatmul.f32.gmra.mxu0 %v332
    %v387 = vpop.f32.mrf.mxu0
    %v388 = vadd.f32 0.0, %v387
    %389 = vmatmul.f32.gmra.mxu0 %v333
    %v390 = vpop.f32.mrf.mxu0
    %v391 = vadd.f32 0.0, %v390
    %392 = vmatmul.f32.gmra.mxu0 %v334
    %v393 = vpop.f32.mrf.mxu0
    %v394 = vadd.f32 0.0, %v393
    %395 = vmatmul.f32.gmra.mxu0 %v335
    %v396 = vpop.f32.mrf.mxu0
    %v397 = vadd.f32 0.0, %v396
    %398 = vmatmul.f32.gmra.mxu0 %v336
    %v399 = vpop.f32.mrf.mxu0
    %v400 = vadd.f32 0.0, %v399
    %401 = vdwg.mxu0
    %v402 = vperm.slane %v90, 0
    %403 = vmatpush.msra.mxu0 %v400
    %404 = vmatpush.msra.mxu0 %v397
    %405 = vmatpush.msra.mxu0 %v394
    %406 = vmatpush.msra.mxu0 %v391
    %407 = vmatpush.msra.mxu0 %v388
    %408 = vmatpush.msra.mxu0 %v385
    %409 = vmatpush.msra.mxu0 %v382
    %410 = vmatpush.msra.mxu0 %v379
    %411 = vmatpush.msra.mxu0 %v376
    %412 = vmatpush.msra.mxu0 %v373
    %413 = vmatpush.msra.mxu0 %v370
    %414 = vmatpush.msra.mxu0 %v367
    %415 = vmatpush.msra.mxu0 %v364
    %416 = vmatpush.msra.mxu0 %v361
    %417 = vmatpush.msra.mxu0 %v358
    %418 = vmatpush.msra.mxu0 %v355
    %419 = vmatmul.f32.gmra.mxu0 %v24
    %v420 = vpop.f32.mrf.mxu0
    %v421 = vadd.f32 %v402, %v420
    %422 = vmatmul.f32.gmra.mxu0 %v25
    %v423 = vpop.f32.mrf.mxu0
    %v424 = vadd.f32 %v402, %v423
    %425 = vmatmul.f32.gmra.mxu0 %v26
    %v426 = vpop.f32.mrf.mxu0
    %v427 = vadd.f32 %v402, %v426
    %428 = vmatmul.f32.gmra.mxu0 %v27
    %v429 = vpop.f32.mrf.mxu0
    %v430 = vadd.f32 %v402, %v429
    %431 = vmatmul.f32.gmra.mxu0 %v28
    %v432 = vpop.f32.mrf.mxu0
    %v433 = vadd.f32 %v402, %v432
    %434 = vmatmul.f32.gmra.mxu0 %v29
    %v435 = vpop.f32.mrf.mxu0
    %v436 = vadd.f32 %v402, %v435
    %437 = vmatmul.f32.gmra.mxu0 %v30
    %v438 = vpop.f32.mrf.mxu0
    %v439 = vadd.f32 %v402, %v438
    %440 = vmatmul.f32.gmra.mxu0 %v31
    %v441 = vpop.f32.mrf.mxu0
    %v442 = vadd.f32 %v402, %v441
    %443 = vmatmul.f32.gmra.mxu0 %v32
    %v444 = vpop.f32.mrf.mxu0
    %v445 = vadd.f32 %v402, %v444
    %446 = vmatmul.f32.gmra.mxu0 %v33
    %v447 = vpop.f32.mrf.mxu0
    %v448 = vadd.f32 %v402, %v447
    %449 = vmatmul.f32.gmra.mxu0 %v34
    %v450 = vpop.f32.mrf.mxu0
    %v451 = vadd.f32 %v402, %v450
    %452 = vmatmul.f32.gmra.mxu0 %v35
    %v453 = vpop.f32.mrf.mxu0
    %v454 = vadd.f32 %v402, %v453
    %455 = vmatmul.f32.gmra.mxu0 %v36
    %v456 = vpop.f32.mrf.mxu0
    %v457 = vadd.f32 %v402, %v456
    %458 = vmatmul.f32.gmra.mxu0 %v37
    %v459 = vpop.f32.mrf.mxu0
    %v460 = vadd.f32 %v402, %v459
    %461 = vmatmul.f32.gmra.mxu0 %v38
    %v462 = vpop.f32.mrf.mxu0
    %v463 = vadd.f32 %v402, %v462
    %464 = vmatmul.f32.gmra.mxu0 %v39
    %v465 = vpop.f32.mrf.mxu0
    %v466 = vadd.f32 %v402, %v465
    %467 = vdwg.mxu0
    %v468 = vtanh.pop %v421
    %v469 = vtanh.pop %v424
    %v470 = vtanh.pop %v427
    %v471 = vtanh.pop %v430
    %v472 = vtanh.pop %v433
    %v473 = vtanh.pop %v436
    %v474 = vtanh.pop %v439
    %v475 = vtanh.pop %v442
    %v476 = vtanh.pop %v445
    %v477 = vtanh.pop %v448
    %v478 = vtanh.pop %v451
    %v479 = vtanh.pop %v454
    %v480 = vtanh.pop %v457
    %v481 = vtanh.pop %v460
    %v482 = vtanh.pop %v463
    %v483 = vtanh.pop %v466
    %v484 = vperm.slane %v107, 0
    %485 = vmatpush.msra.mxu0 %v106
    %486 = vmatpush.msra.mxu0 %v105
    %487 = vmatpush.msra.mxu0 %v104
    %488 = vmatpush.msra.mxu0 %v103
    %489 = vmatpush.msra.mxu0 %v102
    %490 = vmatpush.msra.mxu0 %v101
    %491 = vmatpush.msra.mxu0 %v100
    %492 = vmatpush.msra.mxu0 %v99
    %493 = vmatpush.msra.mxu0 %v98
    %494 = vmatpush.msra.mxu0 %v97
    %495 = vmatpush.msra.mxu0 %v96
    %496 = vmatpush.msra.mxu0 %v95
    %497 = vmatpush.msra.mxu0 %v94
    %498 = vmatpush.msra.mxu0 %v93
    %499 = vmatpush.msra.mxu0 %v92
    %500 = vmatpush.msra.mxu0 %v91
    %501 = vmatmul.f32.gmra.mxu0 %v468
    %v502 = vpop.f32.mrf.mxu0
    %v503 = vadd.f32 %v484, %v502
    %504 = vmatmul.f32.gmra.mxu0 %v469
    %v505 = vpop.f32.mrf.mxu0
    %v506 = vadd.f32 %v484, %v505
    %507 = vmatmul.f32.gmra.mxu0 %v470
    %v508 = vpop.f32.mrf.mxu0
    %v509 = vadd.f32 %v484, %v508
    %510 = vmatmul.f32.gmra.mxu0 %v471
    %v511 = vpop.f32.mrf.mxu0
    %v512 = vadd.f32 %v484, %v511
    %513 = vmatmul.f32.gmra.mxu0 %v472
    %v514 = vpop.f32.mrf.mxu0
    %v515 = vadd.f32 %v484, %v514
    %516 = vmatmul.f32.gmra.mxu0 %v473
    %v517 = vpop.f32.mrf.mxu0
    %v518 = vadd.f32 %v484, %v517
    %519 = vmatmul.f32.gmra.mxu0 %v474
    %v520 = vpop.f32.mrf.mxu0
    %v521 = vadd.f32 %v484, %v520
    %522 = vmatmul.f32.gmra.mxu0 %v475
    %v523 = vpop.f32.mrf.mxu0
    %v524 = vadd.f32 %v484, %v523
    %525 = vmatmul.f32.gmra.mxu0 %v476
    %v526 = vpop.f32.mrf.mxu0
    %v527 = vadd.f32 %v484, %v526
    %528 = vmatmul.f32.gmra.mxu0 %v477
    %v529 = vpop.f32.mrf.mxu0
    %v530 = vadd.f32 %v484, %v529
    %531 = vmatmul.f32.gmra.mxu0 %v478
    %v532 = vpop.f32.mrf.mxu0
    %v533 = vadd.f32 %v484, %v532
    %534 = vmatmul.f32.gmra.mxu0 %v479
    %v535 = vpop.f32.mrf.mxu0
    %v536 = vadd.f32 %v484, %v535
    %537 = vmatmul.f32.gmra.mxu0 %v480
    %v538 = vpop.f32.mrf.mxu0
    %v539 = vadd.f32 %v484, %v538
    %540 = vmatmul.f32.gmra.mxu0 %v481
    %v541 = vpop.f32.mrf.mxu0
    %v542 = vadd.f32 %v484, %v541
    %543 = vmatmul.f32.gmra.mxu0 %v482
    %v544 = vpop.f32.mrf.mxu0
    %v545 = vadd.f32 %v484, %v544
    %546 = vmatmul.f32.gmra.mxu0 %v483
    %v547 = vpop.f32.mrf.mxu0
    %v548 = vadd.f32 %v484, %v547
    %549 = vdwg.mxu0
    %550 = vst [vmem:[%s1] sm:$0xff] %v503
    %551 = vst [vmem:[%s1 + $0x8] sm:$0xff] %v506
    %552 = vst [vmem:[%s1 + $0x10] sm:$0xff] %v509
    %553 = vst [vmem:[%s1 + $0x18] sm:$0xff] %v512
    %554 = vst [vmem:[%s1 + $0x20] sm:$0xff] %v515
    %555 = vst [vmem:[%s1 + $0x28] sm:$0xff] %v518
    %556 = vst [vmem:[%s1 + $0x30] sm:$0xff] %v521
    %557 = vst [vmem:[%s1 + $0x38] sm:$0xff] %v524
    %558 = vst [vmem:[%s1 + $0x40] sm:$0xff] %v527
    %559 = vst [vmem:[%s1 + $0x48] sm:$0xff] %v530
    %560 = vst [vmem:[%s1 + $0x50] sm:$0xff] %v533
    %561 = vst [vmem:[%s1 + $0x58] sm:$0xff] %v536
    %562 = vst [vmem:[%s1 + $0x60] sm:$0xff] %v539
    %563 = vst [vmem:[%s1 + $0x68] sm:$0xff] %v542
    %564 = vst [vmem:[%s1 + $0x70] sm:$0xff] %v545
    %565 = vst [vmem:[%s1 + $0x78] sm:$0xff] %v548
    // Predicated region
    $region10: #{gcn_forward.1} parent=1 // pred_check
      _
    $region11: #{gcn_forward.1} parent=1 // pred_check_branch
      %567 = sbr.rel (0) target = $region13
    $region12: #{gcn_forward.1} parent=1 // pred_region
      _
    $region13: #{gcn_forward.1} parent=1 // pred_fallthru
      _
    // Predicated region
    $region14: #{gcn_forward.1} parent=1 // pred_check
      _
    $region15: #{gcn_forward.1} parent=1 // pred_check_branch
      %569 = sbr.rel (0) target = $region17
    $region16: #{gcn_forward.1} parent=1 // pred_region
      _
    $region17: #{gcn_forward.1} parent=1 // pred_fallthru
      _
    %570 = vsyncpa [#allocation3], 1

</llo_original>
